<compile_context>
chip_gen: v5e
topology: v5e:2x2
jax: 0.10.0
libtpu: 0.0.40
codegen_flags: <defaults>
</compile_context>

<pallas_src>
import functools
import math

import jax
import jax.numpy as jnp
from jax.experimental import pallas as pl
from jax.experimental.pallas import tpu as pltpu


def _round_up(x, m):
    return ((x + m - 1) // m) * m


def _sinpos_kernel(off_ref, inv_freq_ref, tok_ref, out_ref, base_ref, *,
                   padding_idx, tile_s, half, left_pad):
    # off_ref:      (B,)   int32 in SMEM (scalar-prefetched position offsets)
    # inv_freq_ref: (1, half) float32
    # tok_ref:      (1, tile_s, 1) int32   (tokens for row b, tile s)
    # out_ref:      (1, tile_s, D) out_dtype
    # base_ref:     (2, tile_s, half) f32 scratch: [0]=sin(base), [1]=cos(base)
    s = pl.program_id(0)
    b = pl.program_id(1)

    mask = tok_ref[0] != padding_idx                                  # (TS, 1)
    col = jax.lax.broadcasted_iota(jnp.int32, (tile_s, 1), 0)         # (TS, 1)
    lane_aligned = (half % 128 == 0)

    def store_out(sin_m, cos_m):
        # sin_m / cos_m: masked float32 (TS, half)
        if lane_aligned:
            # lane-dense half stores (D % 256 == 0): unmasked vst
            out_ref[0, :, :half] = sin_m.astype(out_ref.dtype)
            out_ref[0, :, half:] = cos_m.astype(out_ref.dtype)
        else:
            # small / unaligned D: concatenate in-vreg, single full-width store
            out_ref[0] = jnp.concatenate([sin_m, cos_m], axis=-1).astype(
                out_ref.dtype)

    if left_pad:
        # Base table (no per-row offset), once per s tile.
        @pl.when(b == 0)
        def _():
            ang = (s * tile_s + col).astype(jnp.float32) * inv_freq_ref[...]
            base_ref[0] = jnp.sin(ang)
            base_ref[1] = jnp.cos(ang)

        # Per-row offset via angle addition: only `half` transcendentals/step.
        off_ang = off_ref[b].astype(jnp.float32) * inv_freq_ref[...]  # (1, half)
        sin_o = jnp.sin(off_ang)
        cos_o = jnp.cos(off_ang)
        sin_b = base_ref[0]
        cos_b = base_ref[1]
        sin_v = sin_b * cos_o + cos_b * sin_o
        cos_v = cos_b * cos_o - sin_b * sin_o
        store_out(jnp.where(mask, sin_v, 0.0), jnp.where(mask, cos_v, 0.0))
    else:
        # Batch-invariant: compute once per s tile, reuse for b > 0.
        @pl.when(b == 0)
        def _():
            pos = (off_ref[0] + s * tile_s + col).astype(jnp.float32)
            ang = pos * inv_freq_ref[...]
            sin_v = jnp.sin(ang)
            cos_v = jnp.cos(ang)
            base_ref[0] = sin_v
            base_ref[1] = cos_v
            # Write the output directly from locals (no scratch re-read).
            store_out(jnp.where(mask, sin_v, 0.0), jnp.where(mask, cos_v, 0.0))

        @pl.when(b > 0)
        def _():
            store_out(jnp.where(mask, base_ref[0], 0.0),
                      jnp.where(mask, base_ref[1], 0.0))


def sinusoidal_positional_embedding(tokens, embedding_dim, padding_idx=0,
                                    left_pad=0, out_dtype=jnp.float32):
    """tokens: [B, S] int array -> [B, S, embedding_dim] positional embeddings."""
    B, S = tokens.shape
    D = int(embedding_dim)
    assert D % 2 == 0 and D >= 4, "only even embedding_dim >= 4 supported"
    # TODO(synk): odd embedding_dim (extra trailing zero column in the PyTorch
    # module) is not implemented.
    half = D // 2
    tokens = tokens.astype(jnp.int32)
    out_dtype = jnp.dtype(out_dtype)
    itemsize = out_dtype.itemsize
    sublane = max(8, 32 // max(itemsize, 1))      # 8 rows (f32), 16 rows (bf16)

    # ---- host-side prep, hoisted out of the hot loop ----
    inv_freq = jnp.exp(jnp.arange(half, dtype=jnp.float32) *
                       (-math.log(10000.0) / (half - 1)))[None, :]   # (1, half)
    if left_pad:
        nonpad = jnp.sum((tokens != padding_idx).astype(jnp.int32), axis=1)
        offsets = (padding_idx + 1 - S) + nonpad                      # (B,)
    else:
        offsets = jnp.full((B,), padding_idx + 1, dtype=jnp.int32)
    offsets = offsets.astype(jnp.int32)
    tok3d = tokens[:, :, None]                                        # (B, S, 1)

    # ---- adaptive tile: target ~2 MiB output blocks (write-bound kernel) ----
    target_rows = (2 << 20) // max(D * itemsize, 1)
    target_rows = min(max(target_rows, 256), 4096)   # cap token lane-pad waste
    target_rows = (target_rows // sublane) * sublane
    if S <= target_rows:
        tile_s = S                                    # full dim: always legal
    else:
        tile_s = max(min(target_rows, (S // sublane) * sublane), sublane)
    ns = pl.cdiv(S, tile_s)

    # Guarantee >= 2 blocks on the "parallel" s axis so both v7x TensorCores
    # get work (harmless on single-TC v5e/v6e).
    if ns == 1 and S >= 2 * sublane:
        cand = _round_up(-(-S // 2), sublane)
        if 0 < cand < S:
            tile_s = cand
            ns = pl.cdiv(S, tile_s)

    # ---- VMEM budget (padded shapes, double-buffered inputs/outputs) ----
    D_pad = _round_up(D, 128)
    half_pad = _round_up(half, 128)
    vmem_bytes = (2 * _round_up(tile_s, sublane) * D_pad * itemsize   # out block
                  + 2 * _round_up(tile_s, 8) * 128 * 4                # tokens (lane-padded)
                  + 2 * 8 * half_pad * 4                              # inv_freq
                  + 2 * _round_up(tile_s, 8) * half_pad * 4           # base scratch
                  + (2 << 20))                                        # slack
    vmem_limit = int(min(max(vmem_bytes, 8 << 20), 48 << 20))  # < v7x 64 MiB VMEM

    # ---- advisory cost estimate (amortized transcendentals) ----
    if left_pad:
        transcendentals = ns * tile_s * D + ns * B * D   # base table + per-row rot angles
        flops = 6 * B * S * D
    else:
        transcendentals = ns * tile_s * D                # once per s tile
        flops = 2 * B * S * D
    cost = pl.CostEstimate(flops=int(flops),
                           transcendentals=int(transcendentals),
                           bytes_accessed=int(B * S * D * itemsize + B * S * 4))

    kernel = functools.partial(_sinpos_kernel, padding_idx=int(padding_idx),
                               tile_s=int(tile_s), half=half,
                               left_pad=bool(left_pad))

    grid_spec = pltpu.PrefetchScalarGridSpec(
        num_scalar_prefetch=1,
        grid=(ns, B),
        in_specs=[
            pl.BlockSpec((1, half), lambda s, b, off: (0, 0)),          # inv_freq
            pl.BlockSpec((1, tile_s, 1), lambda s, b, off: (b, s, 0)),  # tokens
        ],
        out_specs=pl.BlockSpec((1, tile_s, D), lambda s, b, off: (b, s, 0)),
        scratch_shapes=[pltpu.VMEM((2, tile_s, half), jnp.float32)],
    )

    return pl.pallas_call(
        kernel,
        out_shape=jax.ShapeDtypeStruct((B, S, D), out_dtype),
        grid_spec=grid_spec,
        compiler_params=pltpu.CompilerParams(
            # b carries the per-s-tile sin/cos scratch -> "arbitrary";
            # s is independent -> "parallel" (megacore split on v7x).
            dimension_semantics=("parallel", "arbitrary"),
            vmem_limit_bytes=vmem_limit),
        cost_estimate=cost,
    )(offsets, inv_freq, tok3d)


def _reference(tokens, embedding_dim, padding_idx=0, left_pad=0):
    """Pure-JAX port of the PyTorch forward, for verification."""
    B, S = tokens.shape
    max_pos = padding_idx + 1 + S
    half = embedding_dim // 2
    e = math.log(10000.0) / (half - 1)
    freqs = jnp.exp(jnp.arange(half, dtype=jnp.float32) * -e)
    rows = jnp.arange(max_pos, dtype=jnp.float32)[:, None] * freqs[None, :]
    table = jnp.concatenate([jnp.sin(rows), jnp.cos(rows)], axis=1)
    table = table.at[padding_idx].set(0.0)
    mask = tokens != padding_idx
    positions = padding_idx + 1 + jnp.arange(S, dtype=jnp.int32)[None, :]
    positions = jnp.broadcast_to(positions, (B, S))
    if left_pad:
        positions = positions - S + jnp.sum(mask, axis=1, keepdims=True)
    positions = jnp.where(mask, positions, padding_idx)
    return table[positions.reshape(-1)].reshape(B, S, embedding_dim)


def _make_tokens(key, B, S, padding_idx, left_pad):
    toks = jax.random.randint(key, (B, S), minval=padding_idx + 1,
                              maxval=padding_idx + 20, dtype=jnp.int32)
    npad = min(3, S - 1)
    if left_pad:
        toks = toks.at[1, :npad].set(padding_idx)        # pads on the left
    else:
        toks = toks.at[1, S - npad:].set(padding_idx)    # pads on the right
    return toks


if __name__ == "__main__":
    key = jax.random.PRNGKey(0)
    padding_idx = 0
    configs = [
        # (B, S, D, left_pad, out_dtype, atol)
        (2, 8, 32, 0, jnp.float32, 1e-4),
        (2, 8, 32, 1, jnp.float32, 1e-4),
        (2, 20, 32, 0, jnp.float32, 1e-4),     # S not a multiple of tile_s
        (2, 20, 32, 1, jnp.float32, 1e-4),
        (2, 16, 256, 0, jnp.bfloat16, 2e-2),   # lane-aligned halves, bf16 path
        (2, 16, 256, 1, jnp.bfloat16, 2e-2),
    ]
    for i, (B, S, D, lp, dt, atol) in enumerate(configs):
        k = jax.random.fold_in(key, i)
        toks = _make_tokens(k, B, S, padding_idx, lp)
        out = sinusoidal_positional_embedding(toks, D, padding_idx=padding_idx,
                                              left_pad=lp, out_dtype=dt)
        out = jax.block_until_ready(out)
        ref = _reference(toks, D, padding_idx=padding_idx, left_pad=lp)
        assert out.shape == (B, S, D) and out.dtype == jnp.dtype(dt)
        err = float(jnp.max(jnp.abs(out.astype(jnp.float32) - ref)))
        assert err <= atol, \
            f"mismatch vs reference (B={B}, S={S}, D={D}, lp={lp}, dt={dt}): {err}"
    print("KERNEL_OK")
</pallas_src>

<mosaic_0001>
module attributes {stable_mosaic.version = 11 : i64} {
  func.func @_sinpos_kernel(%arg0: i32, %arg1: i32, %arg2: memref<2xi32, #tpu.memory_space<smem>>, %arg3: memref<1x16xf32, #tpu.memory_space<vmem>>, %arg4: memref<1x8x1xi32, #tpu.memory_space<vmem>>, %arg5: memref<1x8x32xf32, #tpu.memory_space<vmem>>, %arg6: memref<2x8x16xf32, #tpu.memory_space<vmem>>) attributes {dimension_semantics = [#tpu.dimension_semantics<parallel>, #tpu.dimension_semantics<arbitrary>], iteration_bounds = array<i64: 1, 2>, scalar_prefetch = 1 : i64, scratch_operands = 1 : i64, tpu.core_type = #tpu.core_type<tc>, window_params = [{pipeline_mode = #tpu.pipeline_mode<synchronous>, transform_indices = @transform_0, window_bounds = array<i64: 1, 16>}, {transform_indices = @transform_1, window_bounds = array<i64: 1, 8, 1>}, {transform_indices = @transform_2, window_bounds = array<i64: 1, 8, 32>}]} {
    %c0 = arith.constant 0 : index
    %c0_0 = arith.constant 0 : index
    %c0_1 = arith.constant 0 : index
    %0 = vector.load %arg4[%c0, %c0_0, %c0_1] : memref<1x8x1xi32, #tpu.memory_space<vmem>>, vector<1x8x1xi32>
    %1 = vector.shape_cast %0 : vector<1x8x1xi32> to vector<8x1xi32>
    %c0_i32 = arith.constant 0 : i32
    %2 = vector.broadcast %c0_i32 : i32 to vector<8x1xi32>
    %3 = arith.cmpi ne, %1, %2 : vector<8x1xi32>
    %4 = tpu.iota {dimensions = array<i32: 0>} : vector<8x1xi32>
    %c0_i32_2 = arith.constant 0 : i32
    %5 = arith.cmpi eq, %arg1, %c0_i32_2 : i32
    %6 = arith.extui %5 : i1 to i32
    %c0_i32_3 = arith.constant 0 : i32
    %7 = arith.cmpi ne, %6, %c0_i32_3 : i32
    scf.if %7 {
      %c0_6 = arith.constant 0 : index
      %11 = memref.load %arg2[%c0_6] : memref<2xi32, #tpu.memory_space<smem>>
      %c8_i32 = arith.constant 8 : i32
      %12 = arith.muli %arg0, %c8_i32 : i32
      %13 = arith.addi %11, %12 : i32
      %14 = vector.broadcast %13 : i32 to vector<8x1xi32>
      %15 = arith.addi %14, %4 : vector<8x1xi32>
      %16 = arith.sitofp %15 : vector<8x1xi32> to vector<8x1xf32>
      %c0_7 = arith.constant 0 : index
      %c0_8 = arith.constant 0 : index
      %17 = vector.load %arg3[%c0_7, %c0_8] : memref<1x16xf32, #tpu.memory_space<vmem>>, vector<1x16xf32>
      %18 = vector.broadcast %16 : vector<8x1xf32> to vector<8x16xf32>
      %19 = vector.broadcast %17 : vector<1x16xf32> to vector<8x16xf32>
      %20 = arith.mulf %18, %19 : vector<8x16xf32>
      %21 = math.sin %20 : vector<8x16xf32>
      %22 = math.cos %20 : vector<8x16xf32>
      %c0_9 = arith.constant 0 : index
      %c0_10 = arith.constant 0 : index
      %c0_11 = arith.constant 0 : index
      %23 = vector.load %arg6[%c0_9, %c0_10, %c0_11] : memref<2x8x16xf32, #tpu.memory_space<vmem>>, vector<1x8x16xf32>
      %24 = vector.shape_cast %23 : vector<1x8x16xf32> to vector<8x16xf32>
      %25 = vector.shape_cast %21 : vector<8x16xf32> to vector<1x8x16xf32>
      tpu.vector_store %arg6[%c0_9, %c0_10, %c0_11], %25 {strides = array<i32>} : memref<2x8x16xf32, #tpu.memory_space<vmem>>, vector<1x8x16xf32>,
      %c1 = arith.constant 1 : index
      %c0_12 = arith.constant 0 : index
      %c0_13 = arith.constant 0 : index
      %26 = vector.load %arg6[%c1, %c0_12, %c0_13] : memref<2x8x16xf32, #tpu.memory_space<vmem>>, vector<1x8x16xf32>
      %27 = vector.shape_cast %26 : vector<1x8x16xf32> to vector<8x16xf32>
      %28 = vector.shape_cast %22 : vector<8x16xf32> to vector<1x8x16xf32>
      tpu.vector_store %arg6[%c1, %c0_12, %c0_13], %28 {strides = array<i32>} : memref<2x8x16xf32, #tpu.memory_space<vmem>>, vector<1x8x16xf32>,
      %cst = arith.constant 0.000000e+00 : f32
      %29 = vector.shape_cast %3 : vector<8x1xi1> to vector<8x1xi1>
      %30 = vector.broadcast %29 : vector<8x1xi1> to vector<8x16xi1>
      %31 = vector.broadcast %cst : f32 to vector<8x16xf32>
      %32 = arith.select %30, %21, %31 : vector<8x16xi1>, vector<8x16xf32>
      %cst_14 = arith.constant 0.000000e+00 : f32
      %33 = vector.shape_cast %3 : vector<8x1xi1> to vector<8x1xi1>
      %34 = vector.broadcast %33 : vector<8x1xi1> to vector<8x16xi1>
      %35 = vector.broadcast %cst_14 : f32 to vector<8x16xf32>
      %36 = arith.select %34, %22, %35 : vector<8x16xi1>, vector<8x16xf32>
      %37 = tpu.concatenate %32, %36 in 1 : vector<8x16xf32>, vector<8x16xf32> -> vector<8x32xf32>
      %c0_15 = arith.constant 0 : index
      %c0_16 = arith.constant 0 : index
      %c0_17 = arith.constant 0 : index
      %38 = vector.load %arg5[%c0_15, %c0_16, %c0_17] : memref<1x8x32xf32, #tpu.memory_space<vmem>>, vector<1x8x32xf32>
      %39 = vector.shape_cast %38 : vector<1x8x32xf32> to vector<8x32xf32>
      %40 = vector.shape_cast %37 : vector<8x32xf32> to vector<1x8x32xf32>
      tpu.vector_store %arg5[%c0_15, %c0_16, %c0_17], %40 {strides = array<i32>} : memref<1x8x32xf32, #tpu.memory_space<vmem>>, vector<1x8x32xf32>,
    } else {
    }
    %c0_i32_4 = arith.constant 0 : i32
    %8 = arith.cmpi sgt, %arg1, %c0_i32_4 : i32
    %9 = arith.extui %8 : i1 to i32
    %c0_i32_5 = arith.constant 0 : i32
    %10 = arith.cmpi ne, %9, %c0_i32_5 : i32
    scf.if %10 {
      %c0_6 = arith.constant 0 : index
      %c0_7 = arith.constant 0 : index
      %c0_8 = arith.constant 0 : index
      %11 = vector.load %arg6[%c0_6, %c0_7, %c0_8] : memref<2x8x16xf32, #tpu.memory_space<vmem>>, vector<1x8x16xf32>
      %12 = vector.shape_cast %11 : vector<1x8x16xf32> to vector<8x16xf32>
      %cst = arith.constant 0.000000e+00 : f32
      %13 = vector.shape_cast %3 : vector<8x1xi1> to vector<8x1xi1>
      %14 = vector.broadcast %13 : vector<8x1xi1> to vector<8x16xi1>
      %15 = vector.broadcast %cst : f32 to vector<8x16xf32>
      %16 = arith.select %14, %12, %15 : vector<8x16xi1>, vector<8x16xf32>
      %c1 = arith.constant 1 : index
      %c0_9 = arith.constant 0 : index
      %c0_10 = arith.constant 0 : index
      %17 = vector.load %arg6[%c1, %c0_9, %c0_10] : memref<2x8x16xf32, #tpu.memory_space<vmem>>, vector<1x8x16xf32>
      %18 = vector.shape_cast %17 : vector<1x8x16xf32> to vector<8x16xf32>
      %cst_11 = arith.constant 0.000000e+00 : f32
      %19 = vector.shape_cast %3 : vector<8x1xi1> to vector<8x1xi1>
      %20 = vector.broadcast %19 : vector<8x1xi1> to vector<8x16xi1>
      %21 = vector.broadcast %cst_11 : f32 to vector<8x16xf32>
      %22 = arith.select %20, %18, %21 : vector<8x16xi1>, vector<8x16xf32>
      %23 = tpu.concatenate %16, %22 in 1 : vector<8x16xf32>, vector<8x16xf32> -> vector<8x32xf32>
      %c0_12 = arith.constant 0 : index
      %c0_13 = arith.constant 0 : index
      %c0_14 = arith.constant 0 : index
      %24 = vector.load %arg5[%c0_12, %c0_13, %c0_14] : memref<1x8x32xf32, #tpu.memory_space<vmem>>, vector<1x8x32xf32>
      %25 = vector.shape_cast %24 : vector<1x8x32xf32> to vector<8x32xf32>
      %26 = vector.shape_cast %23 : vector<8x32xf32> to vector<1x8x32xf32>
      tpu.vector_store %arg5[%c0_12, %c0_13, %c0_14], %26 {strides = array<i32>} : memref<1x8x32xf32, #tpu.memory_space<vmem>>, vector<1x8x32xf32>,
    } else {
    }
    return
  }
  func.func @transform_0(%arg0: i32, %arg1: i32, %arg2: memref<2xi32, #tpu.memory_space<smem>>) -> (i32, i32) {
    %c0_i32 = arith.constant 0 : i32
    %c0_i32_0 = arith.constant 0 : i32
    %c0_i32_1 = arith.constant 0 : i32
    return %c0_i32, %c0_i32_0 : i32, i32
  }
  func.func @transform_1(%arg0: i32, %arg1: i32, %arg2: memref<2xi32, #tpu.memory_space<smem>>) -> (i32, i32, i32) {
    %c0_i32 = arith.constant 0 : i32
    %c0_i32_0 = arith.constant 0 : i32
    return %arg1, %arg0, %c0_i32 : i32, i32, i32
  }
  func.func @transform_2(%arg0: i32, %arg1: i32, %arg2: memref<2xi32, #tpu.memory_space<smem>>) -> (i32, i32, i32) {
    %c0_i32 = arith.constant 0 : i32
    %c0_i32_0 = arith.constant 0 : i32
    return %arg1, %arg0, %c0_i32 : i32, i32, i32
  }
}

</mosaic_0001>

<llo_original>
// kernel: tpu_custom_call.1
$region0: #{tpu_custom_call.1}
  #allocation0 [shape = 'u32[]', space=smem, size = 0x4, offset = 0x4, fixed_abs, tag = 'smem constant byte address 0x4 - core index']
  #allocation1 [shape = 'u32[72,128]{1,0:T(1,128)}', space=vmem, size = 0x9000, scoped, tag = 'internal scratch']
  #allocation2 [shape = 'f32[2,8,16]{2,1,0:T(8,128)}', space=vmem, size = 0x2000, scoped, tag = 'scratch operand']
  #allocation3 [shape = 's32[1]{0}', space=sflag, size = 0x4, scoped, tag = 'scoped memory for tpu_custom_call.1']
  #allocation4 [shape = 'u8[512]{0}', space=smem, size = 0x200, scoped, tag = 'prefetched SMEM operand 0']
  %s0 = inlined_call_operand.vmem [shape: s32[2], index: 0, kind: input, shape index: {}]
  %s1 = inlined_call_operand.vmem [shape: f32[1,16], index: 1, kind: input, shape index: {}]
  %s2 = inlined_call_operand.vmem [shape: s32[2,8,1], index: 2, kind: input, shape index: {}]
  %s3 = inlined_call_operand.hbm [shape: f32[2,8,32], index: 3, kind: output, shape index: {}]
  %s4 = sld [smem:[#allocation0]]
  $region49: #{tpu_custom_call.1} parent=0
    _
  %s6 = ssub.s32 1, %s4
  %s7 = scalar_select 0, %s6, %s4
  %s9 = sshll.u32 %s0, 4
  %s10 = int_to_ptr.vmem [resolvable:$true] %s9
  %12 = dma.vmem_to_smem %s10, 16, [#allocation4], [#allocation3]
  %14 = dma.done [#allocation3], 16
  %15 = sfence
  $region1: #{tpu_custom_call.1} parent=0
    #allocation5 [shape = 'u8[8192]{0}', space=vmem, size = 0x2000, scoped, tag = 'output window, operand 0']
    #allocation6 [shape = 's32[2]{0}', space=sflag, size = 0x8, scoped, tag = 'scoped memory for tpu_custom_call.1']
    %16 = vsyncpa [#allocation6], 0
    %s17 = scalar_lea.sflag [#allocation6], 1
    %18 = vsyncpa %s17, 0
    loop: start=0, step=1, limit=4
    $region2: #{tpu_custom_call.1} parent=1 // loop_pre_header
      _
    $region3: #{tpu_custom_call.1} parent=1 // loop_header
      %s20 = sphi 0, %s24
      %p21 = scmp.ge.s32.totalorder %s20, 4
      %s27 = sphi 0, %s39
      %s28 = sphi 0, %s35
      %s29 = sphi 0, %s27
      %s30 = sphi 0, %s28
      %s31 = sphi 0, %s29
      %s32 = sphi 0, %s30
      %s40 = sphi 0, %s40
      %s42 = sphi 0, %s40
      %s43 = sphi 0, %s42
      %s57 = sphi 0, %s43
      %s65 = sphi 0, %s67
      %s68 = sphi 0, %s65
      %s69 = sphi 0, %s68
      %s85 = sphi 0, %s69
      %s93 = sphi 0, %s95
      %s96 = sphi 0, %s93
      %s97 = sphi 0, %s96
      %s113 = sphi 0, %s97
    $region4: #{tpu_custom_call.1} parent=1 // loop_header_branch
      %23 = sbr.rel (%p21) target = $region8
    $region5: #{tpu_custom_call.1} parent=1 // loop_body
      %s25 = ssub.s32 %s20, 1
      %s26 = ssub.s32 %s20, 2
      %s33 = sadd.s32 1, %s28
      %p34 = scmp.ge.s32.totalorder %s33, 2
      %s35 = scalar_select %p34, 0, %s33
      %s36 = sadd.s32 1, %s27
      %s37 = scalar_select %p34, %s36, %s27
      %p38 = scmp.ge.s32.totalorder %s37, 1
      %s39 = scalar_select %p38, 0, %s37
      %s41 = sadd.s32 %s40, 1
      %p44 = scmp.eq.s32.totalorder %s20, 1
      %p45 = scmp.ne.s32.totalorder %s40, %s42
      %p46 = scmp.eq.s32.totalorder %s20, 0
      %p47 = por %p45, %p46
      %p48 = scmp.ne.s32.totalorder %s40, %s42
      %p49 = scmp.eq.s32.totalorder %s25, 1
      %p50 = por %p48, %p49
      %p51 = scmp.ne.s32.totalorder %s42, %s43
      %p52 = scmp.eq.s32.totalorder %s25, 0
      %p53 = por %p51, %p52
      %p54 = scmp.ne.s32.totalorder %s42, %s43
      %p55 = scmp.eq.s32.totalorder %s26, 1
      %p56 = por %p54, %p55
      %p58 = scmp.ne.s32.totalorder %s43, %s57
      %p59 = scmp.eq.s32.totalorder %s26, 0
      %p60 = por %p58, %p59
      %s61 = ssub.s32 %s28, %s35
      %s62 = ssub.s32 %s27, %s39
      %s63 = sor.u32 %s61, %s62
      %p64 = scmp.eq.s32.totalorder %s63, 0
      %s66 = sadd.s32 %s65, 1
      %s67 = scalar_select %p64, %s65, %s66
      %p70 = pneg %p64
      %p71 = scmp.eq.s32.totalorder %s20, 1
      %p72 = por %p70, %p71
      %p73 = scmp.ne.s32.totalorder %s65, %s68
      %p74 = scmp.eq.s32.totalorder %s20, 0
      %p75 = por %p73, %p74
      %p76 = scmp.ne.s32.totalorder %s65, %s68
      %p77 = scmp.eq.s32.totalorder %s25, 1
      %p78 = por %p76, %p77
      %p79 = scmp.ne.s32.totalorder %s68, %s69
      %p80 = scmp.eq.s32.totalorder %s25, 0
      %p81 = por %p79, %p80
      %p82 = scmp.ne.s32.totalorder %s68, %s69
      %p83 = scmp.eq.s32.totalorder %s26, 1
      %p84 = por %p82, %p83
      %p86 = scmp.ne.s32.totalorder %s69, %s85
      %p87 = scmp.eq.s32.totalorder %s26, 0
      %p88 = por %p86, %p87
      %s89 = ssub.s32 %s28, %s35
      %s90 = ssub.s32 %s27, %s39
      %s91 = sor.u32 %s89, %s90
      %p92 = scmp.eq.s32.totalorder %s91, 0
      %s94 = sadd.s32 %s93, 1
      %s95 = scalar_select %p92, %s93, %s94
      %p98 = pneg %p92
      %p99 = scmp.eq.s32.totalorder %s20, 1
      %p100 = por %p98, %p99
      %p101 = scmp.ne.s32.totalorder %s93, %s96
      %p102 = scmp.eq.s32.totalorder %s20, 0
      %p103 = por %p101, %p102
      %p104 = scmp.ne.s32.totalorder %s93, %s96
      %p105 = scmp.eq.s32.totalorder %s25, 1
      %p106 = por %p104, %p105
      %p107 = scmp.ne.s32.totalorder %s96, %s97
      %p108 = scmp.eq.s32.totalorder %s25, 0
      %p109 = por %p107, %p108
      %p110 = scmp.ne.s32.totalorder %s96, %s97
      %p111 = scmp.eq.s32.totalorder %s26, 1
      %p112 = por %p110, %p111
      %p114 = scmp.ne.s32.totalorder %s97, %s113
      %p115 = scmp.eq.s32.totalorder %s26, 0
      %p116 = por %p114, %p115
      %p117 = scmp.le.s32.totalorder 1, %s20
      %p118 = scmp.lt.s32.totalorder %s20, 3
      %p119 = pnand %p117, %p118
      %p120 = pneg %p119
      // Predicated region
      $region9: #{tpu_custom_call.1} parent=5 // pred_check
        _
      $region10: #{tpu_custom_call.1} parent=5 // pred_check_branch
        %122 = sbr.rel (%p119) target = $region12
      $region11: #{tpu_custom_call.1} parent=5 // pred_region
        %s123 = ssub.s32 %s20, 1
        // Predicated region
        $region13: #{tpu_custom_call.1} parent=11 // pred_check
          %p124 = pneg %p53
        $region14: #{tpu_custom_call.1} parent=11 // pred_check_branch
          %126 = sbr.rel (%p124) target = $region16
        $region15: #{tpu_custom_call.1} parent=11 // pred_region
          _
        $region16: #{tpu_custom_call.1} parent=11 // pred_fallthru
          _
      $region12: #{tpu_custom_call.1} parent=5 // pred_fallthru
        _
      %p127 = scmp.lt.s32.totalorder %s20, 2
      // Predicated region
      $region17: #{tpu_custom_call.1} parent=5 // pred_check
        %p128 = pneg %p127
      $region18: #{tpu_custom_call.1} parent=5 // pred_check_branch
        %130 = sbr.rel (%p128) target = $region20
      $region19: #{tpu_custom_call.1} parent=5 // pred_region
        // Predicated region
        $region21: #{tpu_custom_call.1} parent=19 // pred_check
          %p131 = pneg %p75
        $region22: #{tpu_custom_call.1} parent=19 // pred_check_branch
          %133 = sbr.rel (%p131) target = $region24
        $region23: #{tpu_custom_call.1} parent=19 // pred_region
          %p134 = scmp.lt.s32.totalorder %s28, 1
          %s135 = scalar_select %p134, %s28, 1
          %p136 = scmp.lt.s32.totalorder %s27, 0
          %s137 = scalar_select %p136, %s27, 0
          %s138 = sadd.s32 %s137, %s135
          %s139 = smul.addr %s138, 8
          %s140 = scalar_lea.vmem %s2, %s139
        $region24: #{tpu_custom_call.1} parent=19 // pred_fallthru
          _
      $region20: #{tpu_custom_call.1} parent=5 // pred_fallthru
        _
      %p141 = scmp.le.s32.totalorder 1, %s20
      %p142 = scmp.lt.s32.totalorder %s20, 3
      %p143 = pnand %p141, %p142
      %p144 = pneg %p143
      // Predicated region
      $region25: #{tpu_custom_call.1} parent=5 // pred_check
        _
      $region26: #{tpu_custom_call.1} parent=5 // pred_check_branch
        %146 = sbr.rel (%p143) target = $region28
      $region27: #{tpu_custom_call.1} parent=5 // pred_region
        %s147 = ssub.s32 %s20, 1
        %p148 = pneg %p53
        %p149 = pneg %p50
        %p150 = scmp.lt.s32.totalorder %s30, 1
        %s151 = scalar_select %p150, %s30, 1
        %p152 = scmp.lt.s32.totalorder %s29, 0
        %s153 = scalar_select %p152, %s29, 0
        %s154 = sadd.s32 %s153, %s151
        %s155 = smul.addr %s154, 8
        %s156 = scalar_lea.vmem %s2, %s155
        %p157 = pneg %p81
        %p158 = pneg %p78
        %p159 = pneg %p109
        %p160 = pneg %p106
        %s161 = sand.u32 %s96, 1
        %s162 = scalar_lea.sflag [#allocation6], %s161
        %s163 = sand.u32 %s96, 1
        %s164 = smul.addr %s163, 8
        %s165 = scalar_lea.vmem [#allocation5], %s164
        %p166 = scmp.lt.s32.totalorder %s30, 1
        %s167 = scalar_select %p166, %s30, 1
        %p168 = scmp.lt.s32.totalorder %s29, 0
        %s169 = scalar_select %p168, %s29, 0
        %s170 = sadd.s32 %s169, %s167
        %s171 = smul.addr %s170, 8
        %s172 = scalar_lea.vmem %s2, %s171
        %v173 = vld [vmem:[%s172] sm:$0xff]
        %vm174 = vcmp.ne.s32.totalorder %v173, 0
        %v175 = vlaneseq
        %v176 = vshrl.u32 %v175, 7
        %p177 = scmp.eq.s32.totalorder %s30, 0
        // Predicated region
        $region29: #{tpu_custom_call.1} parent=27 // pred_check
          %p178 = pneg %p177
        $region30: #{tpu_custom_call.1} parent=27 // pred_check_branch
          %180 = sbr.rel (%p178) target = $region32
        $region31: #{tpu_custom_call.1} parent=27 // pred_region
          %s181 = sld [smem:[#allocation4]]
          %s182 = smul.u32 %s29, 8
          %s183 = sadd.s32 %s181, %s182
          %v184 = vstv %s183
          %v185 = vadd.s32 %v184, %v176
          %v186 = vcvt.s32.f32 %v185
          %v187 = vld [vmem:[%s1] sm:$0x1]
          %v189 = vperm.slane %v187, 0
          %v191 = vmul.f32 %v186, %v189
          %v192 = vand.u32 2147483647, %v191
          %vm193 = vcmp.le.f32.partialorder %v192, 0.7853982
          %vm194 = vcmp.lt.s32.totalorder %v191, 0
          %v195 = vand.u32 %v191, 2139095040
          %v196 = vshrl.u32 %v195, 23
          %v197 = vsub.s32 %v196, 127
          %v198 = vand.u32 2147483647, %v191
          %v199 = vand.u32 %v198, 8388607
          %v200 = vor.u32 %v199, 8388608
          %v201 = vsub.s32 0, %v200
          %v202 = vadd.s32 %v197, 1
          %vm203 = vcmp.gt.s32.totalorder %v202, 0
          %v204 = vsel %vm203, %v202, 0
          %v205 = vshrl.u32 %v204, 5
          %v206 = vand.u32 %v204, 31
          %v207 = vsub.s32 32, %v206
          %v208 = vshrl.u32 683565275, %v207
          %v209 = vshll.u32 683565275, %v206
          %v210 = vshrl.u32 2475754826, %v207
          %v211 = vor.u32 %v209, %v210
          %v212 = vshll.u32 2475754826, %v206
          %v213 = vshrl.u32 2131351028, %v207
          %v214 = vor.u32 %v212, %v213
          %v215 = vshll.u32 2131351028, %v206
          %v216 = vshrl.u32 2102212464, %v207
          %v217 = vor.u32 %v215, %v216
          %v218 = vshll.u32 2102212464, %v206
          %v219 = vshrl.u32 920167782, %v207
          %v220 = vor.u32 %v218, %v219
          %v221 = vshll.u32 920167782, %v206
          %v222 = vshrl.u32 1326507024, %v207
          %v223 = vor.u32 %v221, %v222
          %vm224 = vcmp.lt.s32.totalorder %v205, 1
          %vm225 = vcmp.lt.s32.totalorder %v205, 2
          %vm226 = vcmp.lt.s32.totalorder %v205, 3
          %vm227 = vcmp.lt.s32.totalorder %v205, 4
          %v228 = vsel %vm224, %v208, %v211
          %v229 = vsel %vm227, %v217, 2102212464
          %v230 = vsel %vm226, %v214, %v229
          %v231 = vsel %vm225, %v228, %v230
          %v232 = vsel %vm224, %v211, %v214
          %v233 = vsel %vm227, %v220, 920167782
          %v234 = vsel %vm226, %v217, %v233
          %v235 = vsel %vm225, %v232, %v234
          %v236 = vsel %vm224, %v214, %v217
          %v237 = vsel %vm227, %v223, 1326507024
          %v238 = vsel %vm226, %v220, %v237
          %v239 = vsel %vm225, %v236, %v238
          %v240 = vshll.u32 %v200, 8
          %v241 = vand.u32 %v240, 65535
          %v242 = vshrl.u32 %v240, 16
          %v243 = vand.u32 %v239, 65535
          %v244 = vshrl.u32 %v239, 16
          %v245 = vmul.u32 %v241, %v243
          %v246 = vmul.u32 %v241, %v244
          %v247 = vmul.u32 %v242, %v243
          %v248 = vmul.u32 %v242, %v244
          %v249 = vshll.u32 %v246, 16
          %v250 = vshrl.u32 %v246, 16
          %v251 = vshll.u32 %v247, 16
          %v252 = vshrl.u32 %v247, 16
          %vm253 = vc.u32 %v245, %v249
          %v254 = vsel %vm253, 1, 0
          %v255 = vadd.s32 %v245, %v249
          %v256 = vadd.s32 %v248, %v254
          %vm257 = vc.u32 %v255, %v251
          %v258 = vsel %vm257, 1, 0
          %v259 = vadd.s32 %v255, %v251
          %v260 = vadd.s32 %v256, %v258
          %v261 = vadd.s32 %v260, %v250
          %v262 = vadd.s32 %v261, %v252
          %v263 = vand.u32 %v240, 65535
          %v264 = vshrl.u32 %v240, 16
          %v265 = vand.u32 %v235, 65535
          %v266 = vshrl.u32 %v235, 16
          %v267 = vmul.u32 %v263, %v265
          %v268 = vmul.u32 %v263, %v266
          %v269 = vmul.u32 %v264, %v265
          %v270 = vmul.u32 %v264, %v266
          %v271 = vshll.u32 %v268, 16
          %v272 = vshrl.u32 %v268, 16
          %v273 = vshll.u32 %v269, 16
          %v274 = vshrl.u32 %v269, 16
          %vm275 = vc.u32 %v267, %v271
          %v276 = vsel %vm275, 1, 0
          %v277 = vadd.s32 %v267, %v271
          %v278 = vadd.s32 %v270, %v276
          %vm279 = vc.u32 %v277, %v273
          %v280 = vsel %vm279, 1, 0
          %v281 = vadd.s32 %v277, %v273
          %v282 = vadd.s32 %v278, %v280
          %v283 = vadd.s32 %v282, %v272
          %v284 = vadd.s32 %v283, %v274
          %v285 = vmul.u32 %v240, %v231
          %v286 = vadd.s32 %v262, %v281
          %vm287 = vc.u32 %v262, %v281
          %v288 = vadd.s32 %v284, 1
          %v289 = vsel %vm287, %v288, %v284
          %v290 = vadd.s32 %v285, %v289
          %v291 = vadd.s32 %v290, 536870912
          %v292 = vshrl.u32 %v291, 30
          %v293 = vshll.u32 %v292, 30
          %v294 = vsub.s32 %v290, %v293
          %vm295 = vcmp.lt.s32.totalorder %v294, 0
          %v296 = vsub.s32 0, %v294
          %v297 = vsel %vm295, %v296, %v294
          %v298 = vclz %v297
          %v299 = vsub.s32 %v298, 2
          %vm300 = vcmp.gt.s32.totalorder 0, %v299
          %v301 = vsel %vm300, 0, %v299
          %v302 = vsub.s32 32, %v301
          %v303 = vshll.u32 %v294, %v301
          %v304 = vshrl.u32 %v286, %v302
          %v305 = vor.u32 %v303, %v304
          %v306 = vsub.s32 4294967266, %v301
          %v307 = vadd.s32 %v306, 127
          %v308 = vshll.u32 %v307, 23
          %v309 = vor.u32 4788187, %v308
          %v310 = vand.u32 2147483647, %v309
          %v312 = vcvt.s32.f32 %v305
          %v313 = vmul.f32 %v312, %v310
          %v314 = vxor.u32 %v313, 2147483648
          %v315 = vsel %vm194, %v314, %v313
          %v316 = vsub.s32 4, %v292
          %v317 = vsel %vm194, %v316, %v292
          %v318 = vsel %vm193, %v191, %v315
          %v319 = vsel %vm193, 0, %v317
          %v320 = vmul.f32 %v318, %v318
          %v321 = vmul.f32 %v320, -0.001358992
          %v322 = vadd.f32 %v321, 0.041655596
          %v323 = vmul.f32 %v320, %v322
          %v324 = vadd.f32 %v323, -0.4999988
          %v325 = vmul.f32 %v320, %v324
          %v326 = vadd.f32 1.0, %v325
          %v327 = vmul.f32 %v318, %v318
          %v328 = vmul.f32 %v327, -0.00019511016
          %v329 = vadd.f32 %v328, 0.008332121
          %v330 = vmul.f32 %v327, %v329
          %v331 = vadd.f32 %v330, -0.16666654
          %v332 = vmul.f32 %v327, %v331
          %v333 = vadd.f32 %v332, 1.0
          %v334 = vmul.f32 %v333, %v318
          %vm335 = vweird.f32 %v191
          %v336 = vadd.s32 %v319, 3
          %v337 = vand.u32 %v336, 3
          %vm338 = vcmp.lt.s32.totalorder %v337, 2
          %vm339 = vcmp.eq.s32.totalorder %v337, 0
          %v340 = vxor.u32 %v334, 2147483648
          %v341 = vsel %vm339, %v326, %v340
          %vm342 = vcmp.eq.s32.totalorder %v337, 2
          %v343 = vxor.u32 %v326, 2147483648
          %v344 = vsel %vm342, %v343, %v334
          %v345 = vsel %vm338, %v341, %v344
          %v346 = vsel %vm335, nan, %v345
          %v347 = vand.u32 2147483647, %v191
          %vm348 = vcmp.le.f32.partialorder %v347, 0.7853982
          %vm349 = vcmp.lt.s32.totalorder %v191, 0
          %v350 = vand.u32 %v191, 2139095040
          %v351 = vshrl.u32 %v350, 23
          %v352 = vsub.s32 %v351, 127
          %v353 = vand.u32 2147483647, %v191
          %v354 = vand.u32 %v353, 8388607
          %v355 = vor.u32 %v354, 8388608
          %v356 = vsub.s32 0, %v355
          %v357 = vadd.s32 %v352, 1
          %vm358 = vcmp.gt.s32.totalorder %v357, 0
          %v359 = vsel %vm358, %v357, 0
          %v360 = vshrl.u32 %v359, 5
          %v361 = vand.u32 %v359, 31
          %v362 = vsub.s32 32, %v361
          %v363 = vshrl.u32 683565275, %v362
          %v364 = vshll.u32 683565275, %v361
          %v365 = vshrl.u32 2475754826, %v362
          %v366 = vor.u32 %v364, %v365
          %v367 = vshll.u32 2475754826, %v361
          %v368 = vshrl.u32 2131351028, %v362
          %v369 = vor.u32 %v367, %v368
          %v370 = vshll.u32 2131351028, %v361
          %v371 = vshrl.u32 2102212464, %v362
          %v372 = vor.u32 %v370, %v371
          %v373 = vshll.u32 2102212464, %v361
          %v374 = vshrl.u32 920167782, %v362
          %v375 = vor.u32 %v373, %v374
          %v376 = vshll.u32 920167782, %v361
          %v377 = vshrl.u32 1326507024, %v362
          %v378 = vor.u32 %v376, %v377
          %vm379 = vcmp.lt.s32.totalorder %v360, 1
          %vm380 = vcmp.lt.s32.totalorder %v360, 2
          %vm381 = vcmp.lt.s32.totalorder %v360, 3
          %vm382 = vcmp.lt.s32.totalorder %v360, 4
          %v383 = vsel %vm379, %v363, %v366
          %v384 = vsel %vm382, %v372, 2102212464
          %v385 = vsel %vm381, %v369, %v384
          %v386 = vsel %vm380, %v383, %v385
          %v387 = vsel %vm379, %v366, %v369
          %v388 = vsel %vm382, %v375, 920167782
          %v389 = vsel %vm381, %v372, %v388
          %v390 = vsel %vm380, %v387, %v389
          %v391 = vsel %vm379, %v369, %v372
          %v392 = vsel %vm382, %v378, 1326507024
          %v393 = vsel %vm381, %v375, %v392
          %v394 = vsel %vm380, %v391, %v393
          %v395 = vshll.u32 %v355, 8
          %v396 = vand.u32 %v395, 65535
          %v397 = vshrl.u32 %v395, 16
          %v398 = vand.u32 %v394, 65535
          %v399 = vshrl.u32 %v394, 16
          %v400 = vmul.u32 %v396, %v398
          %v401 = vmul.u32 %v396, %v399
          %v402 = vmul.u32 %v397, %v398
          %v403 = vmul.u32 %v397, %v399
          %v404 = vshll.u32 %v401, 16
          %v405 = vshrl.u32 %v401, 16
          %v406 = vshll.u32 %v402, 16
          %v407 = vshrl.u32 %v402, 16
          %vm408 = vc.u32 %v400, %v404
          %v409 = vsel %vm408, 1, 0
          %v410 = vadd.s32 %v400, %v404
          %v411 = vadd.s32 %v403, %v409
          %vm412 = vc.u32 %v410, %v406
          %v413 = vsel %vm412, 1, 0
          %v414 = vadd.s32 %v410, %v406
          %v415 = vadd.s32 %v411, %v413
          %v416 = vadd.s32 %v415, %v405
          %v417 = vadd.s32 %v416, %v407
          %v418 = vand.u32 %v395, 65535
          %v419 = vshrl.u32 %v395, 16
          %v420 = vand.u32 %v390, 65535
          %v421 = vshrl.u32 %v390, 16
          %v422 = vmul.u32 %v418, %v420
          %v423 = vmul.u32 %v418, %v421
          %v424 = vmul.u32 %v419, %v420
          %v425 = vmul.u32 %v419, %v421
          %v426 = vshll.u32 %v423, 16
          %v427 = vshrl.u32 %v423, 16
          %v428 = vshll.u32 %v424, 16
          %v429 = vshrl.u32 %v424, 16
          %vm430 = vc.u32 %v422, %v426
          %v431 = vsel %vm430, 1, 0
          %v432 = vadd.s32 %v422, %v426
          %v433 = vadd.s32 %v425, %v431
          %vm434 = vc.u32 %v432, %v428
          %v435 = vsel %vm434, 1, 0
          %v436 = vadd.s32 %v432, %v428
          %v437 = vadd.s32 %v433, %v435
          %v438 = vadd.s32 %v437, %v427
          %v439 = vadd.s32 %v438, %v429
          %v440 = vmul.u32 %v395, %v386
          %v441 = vadd.s32 %v417, %v436
          %vm442 = vc.u32 %v417, %v436
          %v443 = vadd.s32 %v439, 1
          %v444 = vsel %vm442, %v443, %v439
          %v445 = vadd.s32 %v440, %v444
          %v446 = vadd.s32 %v445, 536870912
          %v447 = vshrl.u32 %v446, 30
          %v448 = vshll.u32 %v447, 30
          %v449 = vsub.s32 %v445, %v448
          %vm450 = vcmp.lt.s32.totalorder %v449, 0
          %v451 = vsub.s32 0, %v449
          %v452 = vsel %vm450, %v451, %v449
          %v453 = vclz %v452
          %v454 = vsub.s32 %v453, 2
          %vm455 = vcmp.gt.s32.totalorder 0, %v454
          %v456 = vsel %vm455, 0, %v454
          %v457 = vsub.s32 32, %v456
          %v458 = vshll.u32 %v449, %v456
          %v459 = vshrl.u32 %v441, %v457
          %v460 = vor.u32 %v458, %v459
          %v461 = vsub.s32 4294967266, %v456
          %v462 = vadd.s32 %v461, 127
          %v463 = vshll.u32 %v462, 23
          %v464 = vor.u32 4788187, %v463
          %v465 = vand.u32 2147483647, %v464
          %v467 = vcvt.s32.f32 %v460
          %v468 = vmul.f32 %v467, %v465
          %v469 = vxor.u32 %v468, 2147483648
          %v470 = vsel %vm349, %v469, %v468
          %v471 = vsub.s32 4, %v447
          %v472 = vsel %vm349, %v471, %v447
          %v473 = vsel %vm348, %v191, %v470
          %v474 = vsel %vm348, 0, %v472
          %v475 = vmul.f32 %v473, %v473
          %v476 = vmul.f32 %v475, -0.001358992
          %v477 = vadd.f32 %v476, 0.041655596
          %v478 = vmul.f32 %v475, %v477
          %v479 = vadd.f32 %v478, -0.4999988
          %v480 = vmul.f32 %v475, %v479
          %v481 = vadd.f32 1.0, %v480
          %v482 = vmul.f32 %v473, %v473
          %v483 = vmul.f32 %v482, -0.00019511016
          %v484 = vadd.f32 %v483, 0.008332121
          %v485 = vmul.f32 %v482, %v484
          %v486 = vadd.f32 %v485, -0.16666654
          %v487 = vmul.f32 %v482, %v486
          %v488 = vadd.f32 %v487, 1.0
          %v489 = vmul.f32 %v488, %v473
          %vm490 = vweird.f32 %v191
          %v491 = vand.u32 %v474, 3
          %vm492 = vcmp.lt.s32.totalorder %v491, 2
          %vm493 = vcmp.eq.s32.totalorder %v491, 0
          %v494 = vxor.u32 %v489, 2147483648
          %v495 = vsel %vm493, %v481, %v494
          %vm496 = vcmp.eq.s32.totalorder %v491, 2
          %v497 = vxor.u32 %v481, 2147483648
          %v498 = vsel %vm496, %v497, %v489
          %v499 = vsel %vm492, %v495, %v498
          %v500 = vsel %vm490, nan, %v499
          %vm501 = vcmask 130048
          %502 = vst.msk [vmem:[#allocation2] sm:$0xff] %vm501, %v346
          %s503 = scalar_lea.vmem [#allocation2], 8
          %504 = vst.msk [vmem:[%s503] sm:$0xff] %vm501, %v500
          %v505 = vsel %vm174, 1, 0
          %506 = vset.pattern.permute.xlu0 0
          %507 = vperm.xlu0 %506, %v505
          %v508 = vpop.permute.xlu0 %507
          %vm509 = vcmp.eq.s32.totalorder %v508, 1
          %v510 = vsel %vm509, %v346, 0.0
          %v511 = vsel %vm509, %v500, 0.0
          %513 = vrot.lane.b32.xlu0 %v511, 16
          %v514 = vpop.permute.xlu0 %513
          %v516 = vsel %vm501, %v510, %v514
          %vm517 = vcmask 261120
          %518 = vst.msk [vmem:[%s165] sm:$0xff] %vm517, %v516
        $region32: #{tpu_custom_call.1} parent=27 // pred_fallthru
          _
        %p519 = scmp.gt.s32.totalorder %s30, 0
        // Predicated region
        $region33: #{tpu_custom_call.1} parent=27 // pred_check
          %p520 = pneg %p519
        $region34: #{tpu_custom_call.1} parent=27 // pred_check_branch
          %522 = sbr.rel (%p520) target = $region36
        $region35: #{tpu_custom_call.1} parent=27 // pred_region
          %v523 = vld [vmem:[#allocation2] sm:$0xff]
          %v524 = vsel %vm174, 1, 0
          %525 = vset.pattern.permute.xlu0 0
          %526 = vperm.xlu0 %525, %v524
          %v527 = vpop.permute.xlu0 %526
          %vm528 = vcmp.eq.s32.totalorder %v527, 1
          %v529 = vsel %vm528, %v523, 0.0
          %s530 = scalar_lea.vmem [#allocation2], 8
          %v531 = vld [vmem:[%s530] sm:$0xff]
          %v532 = vsel %vm528, %v531, 0.0
          %534 = vrot.lane.b32.xlu0 %v532, 16
          %v535 = vpop.permute.xlu0 %534
          %vm537 = vcmask 130048
          %v538 = vsel %vm537, %v529, %v535
          %vm539 = vcmask 261120
          %540 = vst.msk [vmem:[%s165] sm:$0xff] %vm539, %v538
        $region36: #{tpu_custom_call.1} parent=27 // pred_fallthru
          _
        %s541 = sand.u32 %s96, 1
        %s542 = scalar_lea.sflag [#allocation6], %s541
        %s543 = sand.u32 %s96, 1
        %s544 = smul.addr %s543, 8
        %s545 = scalar_lea.vmem [#allocation5], %s544
        // Predicated region
        $region37: #{tpu_custom_call.1} parent=27 // pred_check
          %p546 = pneg %p106
        $region38: #{tpu_custom_call.1} parent=27 // pred_check_branch
          %548 = sbr.rel (%p546) target = $region40
        $region39: #{tpu_custom_call.1} parent=27 // pred_region
          %550 = vsyncadd %s542, 0
          %s551 = sadd.s32 %s29, %s30
          %s552 = smul.addr %s551, 8
          %s553 = scalar_lea.hbm %s3, %s552
          %s555 = sshll.u32 %s545, 4
          %s556 = int_to_ptr.vmem [resolvable:$true] %s555
          %s557 = sshll.u32 %s553, 4
          %s558 = int_to_ptr.hbm [resolvable:$true] %s557
          %560 = dma.vmem_to_hbm [thread:$0]  %s556, 128, %s558, %s542
        $region40: #{tpu_custom_call.1} parent=27 // pred_fallthru
          _
      $region28: #{tpu_custom_call.1} parent=5 // pred_fallthru
        _
      %p561 = scmp.le.s32.totalorder 2, %s20
      // Predicated region
      $region41: #{tpu_custom_call.1} parent=5 // pred_check
        %p562 = pneg %p561
      $region42: #{tpu_custom_call.1} parent=5 // pred_check_branch
        %564 = sbr.rel (%p562) target = $region44
      $region43: #{tpu_custom_call.1} parent=5 // pred_region
        %s565 = ssub.s32 %s20, 2
        // Predicated region
        $region45: #{tpu_custom_call.1} parent=43 // pred_check
          %p566 = pneg %p112
        $region46: #{tpu_custom_call.1} parent=43 // pred_check_branch
          %568 = sbr.rel (%p566) target = $region48
        $region47: #{tpu_custom_call.1} parent=43 // pred_region
          %s569 = sand.u32 %s97, 1
          %s570 = scalar_lea.sflag [#allocation6], %s569
          %s571 = sand.u32 %s97, 1
          %s572 = smul.addr %s571, 8
          %s573 = scalar_lea.vmem [#allocation5], %s572
          %575 = dma.done %s570, 128
        $region48: #{tpu_custom_call.1} parent=43 // pred_fallthru
          _
      $region44: #{tpu_custom_call.1} parent=5 // pred_fallthru
        _
    $region6: #{tpu_custom_call.1} parent=1 // loop_footer
      %s24 = sadd.s32 1, %s20
    $region7: #{tpu_custom_call.1} parent=1 // loop_footer_branch
      %19 = sbr.rel target = $region3
    $region8: #{tpu_custom_call.1} parent=1 // loop_exit
      _
    %576 = vsyncpa [#allocation6], 1
    %s577 = scalar_lea.sflag [#allocation6], 1
    %578 = vsyncpa %s577, 1

</llo_original>
